<compile_context>
chip_gen: v6e
topology: v6e:2x2x1
jax: 0.10.0
libtpu: 0.0.40
codegen_flags: <defaults>
</compile_context>

<pallas_src>
import math

import jax
import jax.numpy as jnp
from jax.experimental import pallas as pl
from jax.experimental.pallas import tpu as pltpu


_INV_SQRT2 = 1.0 / math.sqrt(2.0)


def _linear_gelu_kernel(x_ref, w_ref, b_ref, o_ref):
    """Fused o = GELU(x @ w + b) for one (row_tile, col_tile) output tile."""
    h = jnp.dot(x_ref[...], w_ref[...], preferred_element_type=jnp.float32)
    h = h + b_ref[...]  # (1, col_tile) f32 bias broadcasts over rows
    # Exact (erf-based) GELU, matching torch.nn.GELU() default.
    o_ref[...] = (0.5 * h * (1.0 + jax.lax.erf(h * _INV_SQRT2))).astype(o_ref.dtype)


def baseline_model_forward(
    x, w, b, *, row_tile=256, col_tile=512, compute_dtype=jnp.float32
):
    """
    x: [num_nodes, num_timestamps, features_dim] float32
    w: [features_dim, hidden_dim] float32   (transposed nn.Linear weight)
    b: [hidden_dim] float32
    compute_dtype: dtype for x/w fed to the MXU (f32 or bf16); accumulation,
                   bias-add and GELU are always f32.
    returns: [num_nodes, num_timestamps, hidden_dim] float32
    """
    n, t, f = x.shape
    f_w, hidden = w.shape
    assert f_w == f, "weight must be [features_dim, hidden_dim]"
    m = n * t

    # --- tile-size selection (clamped to the real problem size) ---------------
    m8 = 8 * pl.cdiv(m, 8)                     # sublane-aligned row count
    row_tile = min(row_tile, m8)
    row_tile = 8 * pl.cdiv(row_tile, 8)        # keep multiple of 8
    m_pad = row_tile * pl.cdiv(m, row_tile)

    h128 = 128 * pl.cdiv(hidden, 128)          # lane-aligned hidden dim
    col_tile = min(col_tile, h128)             # multiple of 128 by construction
    h_pad = col_tile * pl.cdiv(hidden, col_tile)

    # --- pad operands (zeros -> GELU(pad)=irrelevant rows / 0 cols, sliced off) -
    x2d = x.reshape(m, f).astype(compute_dtype)
    if m_pad != m:
        x2d = jnp.pad(x2d, ((0, m_pad - m), (0, 0)))

    w_p = w.astype(compute_dtype)
    b_p = b.astype(jnp.float32).reshape(1, hidden)
    if h_pad != hidden:
        w_p = jnp.pad(w_p, ((0, 0), (0, h_pad - hidden)))
        b_p = jnp.pad(b_p, ((0, 0), (0, h_pad - hidden)))

    grid = (m_pad // row_tile, h_pad // col_tile)

    out2d = pl.pallas_call(
        _linear_gelu_kernel,
        out_shape=jax.ShapeDtypeStruct((m_pad, h_pad), jnp.float32),
        grid_spec=pl.GridSpec(
            grid=grid,
            in_specs=[
                pl.BlockSpec((row_tile, f), lambda i, j: (i, 0)),     # x row tile
                pl.BlockSpec((f, col_tile), lambda i, j: (0, j)),     # weight col tile
                pl.BlockSpec((1, col_tile), lambda i, j: (0, j)),     # bias col tile
            ],
            out_specs=pl.BlockSpec((row_tile, col_tile), lambda i, j: (i, j)),
        ),
        compiler_params=pltpu.CompilerParams(
            # Both output-tile axes are independent -> shard across TensorCores.
            dimension_semantics=("parallel", "parallel"),
        ),
    )(x2d, w_p, b_p)

    return out2d[:m, :hidden].reshape(n, t, hidden)


def _reference_forward(x, w, b):
    h = jnp.einsum("ntf,fh->nth", x, w) + b
    return 0.5 * h * (1.0 + jax.lax.erf(h / jnp.sqrt(2.0)))


if __name__ == "__main__":
    key = jax.random.PRNGKey(0)

    # --- main test: small, module-consistent shapes ---------------------------
    num_nodes = 8          # graph nodes
    num_timestamps = 8     # sequence length (seq_encoder_seq_len)
    features_dim = 32
    hidden_dim = 32

    kx, kw, kb, kx2, kw2, kb2 = jax.random.split(key, 6)

    x = jax.random.normal(kx, (num_nodes, num_timestamps, features_dim), jnp.float32)
    bound = 1.0 / math.sqrt(features_dim)
    w = jax.random.uniform(
        kw, (features_dim, hidden_dim), jnp.float32, minval=-bound, maxval=bound
    )
    b = jax.random.uniform(kb, (hidden_dim,), jnp.float32, minval=-bound, maxval=bound)

    # Dummy graph (edge_index) — unused because the baseline adapter is omitted.
    edge_index = jnp.zeros((2, 1), jnp.int32)

    ref = _reference_forward(x, w, b)

    # f32 path (bit-faithful to the torch module up to accumulation order).
    out = baseline_model_forward(x, w, b)
    out = jax.block_until_ready(out)
    assert out.shape == (num_nodes, num_timestamps, hidden_dim)
    assert jnp.allclose(out, ref, atol=1e-5, rtol=1e-5)

    # bf16-input path (halves HBM read traffic on v6e/v7x; f32 accumulation).
    out_bf16 = baseline_model_forward(x, w, b, compute_dtype=jnp.bfloat16)
    out_bf16 = jax.block_until_ready(out_bf16)
    assert jnp.allclose(out_bf16, ref, atol=5e-2, rtol=5e-2)

    # --- padding / remainder test: ragged shapes ------------------------------
    x2 = jax.random.normal(kx2, (5, 7, 20), jnp.float32)
    bound2 = 1.0 / math.sqrt(20)
    w2 = jax.random.uniform(kw2, (20, 48), jnp.float32, minval=-bound2, maxval=bound2)
    b2 = jax.random.uniform(kb2, (48,), jnp.float32, minval=-bound2, maxval=bound2)
    out2 = jax.block_until_ready(baseline_model_forward(x2, w2, b2))
    assert out2.shape == (5, 7, 48)
    assert jnp.allclose(out2, _reference_forward(x2, w2, b2), atol=1e-5, rtol=1e-5)

    print("KERNEL_OK")
</pallas_src>

<mosaic_0001>
module attributes {stable_mosaic.version = 11 : i64} {
  func.func @_linear_gelu_kernel(%arg0: i32, %arg1: i32, %arg2: memref<64x32xf32, #tpu.memory_space<vmem>>, %arg3: memref<32x128xf32, #tpu.memory_space<vmem>>, %arg4: memref<1x128xf32, #tpu.memory_space<vmem>>, %arg5: memref<64x128xf32, #tpu.memory_space<vmem>>) attributes {dimension_semantics = [#tpu.dimension_semantics<parallel>, #tpu.dimension_semantics<parallel>], iteration_bounds = array<i64: 1, 1>, scalar_prefetch = 0 : i64, scratch_operands = 0 : i64, tpu.core_type = #tpu.core_type<tc>, window_params = [{transform_indices = @transform_0, window_bounds = array<i64: 64, 32>}, {transform_indices = @transform_1, window_bounds = array<i64: 32, 128>}, {transform_indices = @transform_2, window_bounds = array<i64: 1, 128>}, {transform_indices = @transform_3, window_bounds = array<i64: 64, 128>}]} {
    %c0 = arith.constant 0 : index
    %c0_0 = arith.constant 0 : index
    %0 = vector.load %arg2[%c0, %c0_0] : memref<64x32xf32, #tpu.memory_space<vmem>>, vector<64x32xf32>
    %c0_1 = arith.constant 0 : index
    %c0_2 = arith.constant 0 : index
    %1 = vector.load %arg3[%c0_1, %c0_2] : memref<32x128xf32, #tpu.memory_space<vmem>>, vector<32x128xf32>
    %cst = arith.constant dense<0.000000e+00> : vector<64x128xf32>
    %2 = tpu.matmul %0, %1, %cst {dimension_numbers = #tpu.dot_dimension_numbers<[1], [0], [0], [1], [0, 0, 1, 1], [], []>} : vector<64x32xf32>, vector<32x128xf32>, vector<64x128xf32> -> vector<64x128xf32>
    %c0_3 = arith.constant 0 : index
    %c0_4 = arith.constant 0 : index
    %3 = vector.load %arg4[%c0_3, %c0_4] : memref<1x128xf32, #tpu.memory_space<vmem>>, vector<1x128xf32>
    %4 = vector.broadcast %3 : vector<1x128xf32> to vector<64x128xf32>
    %5 = arith.addf %2, %4 : vector<64x128xf32>
    %cst_5 = arith.constant 5.000000e-01 : f32
    %6 = vector.broadcast %cst_5 : f32 to vector<64x128xf32>
    %7 = arith.mulf %6, %5 : vector<64x128xf32>
    %cst_6 = arith.constant 0.707106769 : f32
    %8 = vector.broadcast %cst_6 : f32 to vector<64x128xf32>
    %9 = arith.mulf %5, %8 : vector<64x128xf32>
    %10 = math.erf %9 : vector<64x128xf32>
    %cst_7 = arith.constant 1.000000e+00 : f32
    %11 = vector.broadcast %cst_7 : f32 to vector<64x128xf32>
    %12 = arith.addf %11, %10 : vector<64x128xf32>
    %13 = arith.mulf %7, %12 : vector<64x128xf32>
    %c0_8 = arith.constant 0 : index
    %c0_9 = arith.constant 0 : index
    %14 = vector.load %arg5[%c0_8, %c0_9] : memref<64x128xf32, #tpu.memory_space<vmem>>, vector<64x128xf32>
    tpu.vector_store %arg5[%c0_8, %c0_9], %13 {strides = array<i32>} : memref<64x128xf32, #tpu.memory_space<vmem>>, vector<64x128xf32>,
    return
  }
  func.func @transform_0(%arg0: i32, %arg1: i32) -> (i32, i32) {
    %c0_i32 = arith.constant 0 : i32
    %c0_i32_0 = arith.constant 0 : i32
    return %arg0, %c0_i32 : i32, i32
  }
  func.func @transform_1(%arg0: i32, %arg1: i32) -> (i32, i32) {
    %c0_i32 = arith.constant 0 : i32
    %c0_i32_0 = arith.constant 0 : i32
    return %c0_i32, %arg1 : i32, i32
  }
  func.func @transform_2(%arg0: i32, %arg1: i32) -> (i32, i32) {
    %c0_i32 = arith.constant 0 : i32
    %c0_i32_0 = arith.constant 0 : i32
    return %c0_i32, %arg1 : i32, i32
  }
  func.func @transform_3(%arg0: i32, %arg1: i32) -> (i32, i32) {
    %c0_i32 = arith.constant 0 : i32
    return %arg0, %arg1 : i32, i32
  }
}

</mosaic_0001>

<llo_original>
// kernel: tpu_custom_call.1
$region0: #{tpu_custom_call.1}
  #allocation0 [shape = 'u32[]', space=smem, size = 0x4, offset = 0x4, fixed_abs, tag = 'smem constant byte address 0x4 - core index']
  #allocation1 [shape = 'u32[144,128]{1,0:T(1,128)}', space=vmem, size = 0x12000, scoped, tag = 'internal scratch']
  %s0 = inlined_call_operand.vmem [shape: f32[64,32], index: 0, kind: input, shape index: {}]
  %s1 = inlined_call_operand.vmem [shape: f32[32,128], index: 1, kind: input, shape index: {}]
  %s2 = inlined_call_operand.vmem [shape: f32[1,128], index: 2, kind: input, shape index: {}]
  %s3 = inlined_call_operand.hbm [shape: f32[64,128], index: 3, kind: output, shape index: {}]
  %s4 = sld [smem:[#allocation0]]
  $region22: #{tpu_custom_call.1} parent=0
    _
  %s6 = ssub.s32 1, %s4
  %s7 = scalar_select 0, %s6, %s4
  $region1: #{tpu_custom_call.1} parent=0
    #allocation2 [shape = 'u8[32768]{0}', space=vmem, size = 0x8000, scoped, tag = 'output window, operand 0, single buffered']
    #allocation3 [shape = 's32[1]{0}', space=sflag, size = 0x4, scoped, tag = 'scoped memory for tpu_custom_call.1']
    %8 = vsyncpa [#allocation3], 0
    // Predicated region
    $region2: #{tpu_custom_call.1} parent=1 // pred_check
      _
    $region3: #{tpu_custom_call.1} parent=1 // pred_check_branch
      %10 = sbr.rel (0) target = $region5
    $region4: #{tpu_custom_call.1} parent=1 // pred_region
      _
    $region5: #{tpu_custom_call.1} parent=1 // pred_fallthru
      _
    // Predicated region
    $region6: #{tpu_custom_call.1} parent=1 // pred_check
      _
    $region7: #{tpu_custom_call.1} parent=1 // pred_check_branch
      %12 = sbr.rel (0) target = $region9
    $region8: #{tpu_custom_call.1} parent=1 // pred_region
      _
    $region9: #{tpu_custom_call.1} parent=1 // pred_fallthru
      _
    // Predicated region
    $region10: #{tpu_custom_call.1} parent=1 // pred_check
      _
    $region11: #{tpu_custom_call.1} parent=1 // pred_check_branch
      %14 = sbr.rel (0) target = $region13
    $region12: #{tpu_custom_call.1} parent=1 // pred_region
      _
    $region13: #{tpu_custom_call.1} parent=1 // pred_fallthru
      _
    %v15 = vld [vmem:[%s0] sm:$0xff]
    %v16 = vld [vmem:[%s0 + $0x8] sm:$0xff]
    %v17 = vld [vmem:[%s0 + $0x10] sm:$0xff]
    %v18 = vld [vmem:[%s0 + $0x18] sm:$0xff]
    %v19 = vld [vmem:[%s0 + $0x20] sm:$0xff]
    %v20 = vld [vmem:[%s0 + $0x28] sm:$0xff]
    %v21 = vld [vmem:[%s0 + $0x30] sm:$0xff]
    %v22 = vld [vmem:[%s0 + $0x38] sm:$0xff]
    %v23 = vld [vmem:[%s1] sm:$0xff]
    %v24 = vld [vmem:[%s1 + $0x8] sm:$0xff]
    %v25 = vld [vmem:[%s1 + $0x10] sm:$0xff]
    %v26 = vld [vmem:[%s1 + $0x18] sm:$0xff]
    %v27 = vld [vmem:[%s2] sm:$0x1]
    %v29 = vlaneseq
    %v30 = vshrl.u32 %v29, 7
    %v31 = vsub.s32 0, %v30
    %v32 = vrot.slane %v27, %v31
    %vm34 = vcmask 261120
    %v36 = vsel %vm34, %v15, 0
    %v39 = vsel %vm34, %v16, 0
    %v42 = vsel %vm34, %v17, 0
    %v45 = vsel %vm34, %v18, 0
    %v48 = vsel %vm34, %v19, 0
    %v51 = vsel %vm34, %v20, 0
    %v54 = vsel %vm34, %v21, 0
    %v57 = vsel %vm34, %v22, 0
    %59 = vmatprep.subr.mxu0 0.0
    %60 = vmatpush1.msra.mxu0 0.0
    %61 = vmatprep.subr.mxu0 0.0
    %62 = vmatpush1.msra.mxu0 0.0
    %63 = vmatprep.subr.mxu0 0.0
    %64 = vmatpush1.msra.mxu0 0.0
    %65 = vmatprep.subr.mxu0 0.0
    %66 = vmatpush1.msra.mxu0 0.0
    %67 = vmatprep.subr.mxu0 0.0
    %68 = vmatpush1.msra.mxu0 0.0
    %69 = vmatprep.subr.mxu0 0.0
    %70 = vmatpush1.msra.mxu0 0.0
    %71 = vmatprep.subr.mxu0 0.0
    %72 = vmatpush1.msra.mxu0 0.0
    %73 = vmatprep.subr.mxu0 0.0
    %74 = vmatpush1.msra.mxu0 0.0
    %75 = vmatprep.subr.mxu0 0.0
    %76 = vmatpush1.msra.mxu0 0.0
    %77 = vmatprep.subr.mxu0 0.0
    %78 = vmatpush1.msra.mxu0 0.0
    %79 = vmatprep.subr.mxu0 0.0
    %80 = vmatpush1.msra.mxu0 0.0
    %81 = vmatprep.subr.mxu0 0.0
    %82 = vmatpush1.msra.mxu0 0.0
    %83 = vmatprep.subr.mxu0 0.0
    %84 = vmatpush1.msra.mxu0 %v26
    %85 = vmatprep.subr.mxu0 0.0
    %86 = vmatpush1.msra.mxu0 %v25
    %87 = vmatprep.subr.mxu0 0.0
    %88 = vmatpush1.msra.mxu0 %v24
    %89 = vmatprep.subr.mxu0 0.0
    %90 = vmatpush1.msra.mxu0 %v23
    %91 = vmatprep.subr.mxu0 0.0
    %92 = vmatpush2.msra.mxu0 0.0
    %93 = vmatprep.subr.mxu0 0.0
    %94 = vmatpush2.msra.mxu0 0.0
    %95 = vmatprep.subr.mxu0 0.0
    %96 = vmatpush2.msra.mxu0 0.0
    %97 = vmatprep.subr.mxu0 0.0
    %98 = vmatpush2.msra.mxu0 0.0
    %99 = vmatprep.subr.mxu0 0.0
    %100 = vmatpush2.msra.mxu0 0.0
    %101 = vmatprep.subr.mxu0 0.0
    %102 = vmatpush2.msra.mxu0 0.0
    %103 = vmatprep.subr.mxu0 0.0
    %104 = vmatpush2.msra.mxu0 0.0
    %105 = vmatprep.subr.mxu0 0.0
    %106 = vmatpush2.msra.mxu0 0.0
    %107 = vmatprep.subr.mxu0 0.0
    %108 = vmatpush2.msra.mxu0 0.0
    %109 = vmatprep.subr.mxu0 0.0
    %110 = vmatpush2.msra.mxu0 0.0
    %111 = vmatprep.subr.mxu0 0.0
    %112 = vmatpush2.msra.mxu0 0.0
    %113 = vmatprep.subr.mxu0 0.0
    %114 = vmatpush2.msra.mxu0 0.0
    %115 = vmatprep.subr.mxu0 0.0
    %116 = vmatpush2.msra.mxu0 0.0
    %117 = vmatprep.subr.mxu0 0.0
    %118 = vmatpush2.msra.mxu0 0.0
    %119 = vmatprep.subr.mxu0 0.0
    %120 = vmatpush2.msra.mxu0 0.0
    %121 = vmatprep.subr.mxu0 0.0
    %122 = vmatpush2.msra.mxu0 0.0
    %123 = vmatprep.mubr.f32.mxu0 0.0
    %124 = vmatmul.mubr.f32.gmra.mxu0 %v36
    %v125 = vpop.f32.mrf.mxu0
    %v126 = vadd.f32 %v32, %v125
    %v127 = vpop.f32.mrf.mxu0
    %128 = vmatprep.mubr.f32.mxu0 0.0
    %129 = vmatmul.mubr.f32.gmra.mxu0 %v39
    %v130 = vpop.f32.mrf.mxu0
    %v131 = vadd.f32 %v32, %v130
    %v132 = vpop.f32.mrf.mxu0
    %133 = vmatprep.mubr.f32.mxu0 0.0
    %134 = vmatmul.mubr.f32.gmra.mxu0 %v42
    %v135 = vpop.f32.mrf.mxu0
    %v136 = vadd.f32 %v32, %v135
    %v137 = vpop.f32.mrf.mxu0
    %138 = vmatprep.mubr.f32.mxu0 0.0
    %139 = vmatmul.mubr.f32.gmra.mxu0 %v45
    %v140 = vpop.f32.mrf.mxu0
    %v141 = vadd.f32 %v32, %v140
    %v142 = vpop.f32.mrf.mxu0
    %143 = vmatprep.mubr.f32.mxu0 0.0
    %144 = vmatmul.mubr.f32.gmra.mxu0 %v48
    %v145 = vpop.f32.mrf.mxu0
    %v146 = vadd.f32 %v32, %v145
    %v147 = vpop.f32.mrf.mxu0
    %148 = vmatprep.mubr.f32.mxu0 0.0
    %149 = vmatmul.mubr.f32.gmra.mxu0 %v51
    %v150 = vpop.f32.mrf.mxu0
    %v151 = vadd.f32 %v32, %v150
    %v152 = vpop.f32.mrf.mxu0
    %153 = vmatprep.mubr.f32.mxu0 0.0
    %154 = vmatmul.mubr.f32.gmra.mxu0 %v54
    %v155 = vpop.f32.mrf.mxu0
    %v156 = vadd.f32 %v32, %v155
    %v157 = vpop.f32.mrf.mxu0
    %158 = vmatprep.mubr.f32.mxu0 0.0
    %159 = vmatmul.mubr.f32.gmra.mxu0 %v57
    %v160 = vpop.f32.mrf.mxu0
    %v161 = vadd.f32 %v32, %v160
    %v162 = vpop.f32.mrf.mxu0
    %163 = vdwg.mxu0
    %v164 = vmul.f32 %v126, 0.5
    %v165 = vmul.f32 %v131, 0.5
    %v166 = vmul.f32 %v136, 0.5
    %v167 = vmul.f32 %v141, 0.5
    %v168 = vmul.f32 %v146, 0.5
    %v169 = vmul.f32 %v151, 0.5
    %v170 = vmul.f32 %v156, 0.5
    %v171 = vmul.f32 %v161, 0.5
    %v172 = vmul.f32 %v126, 0.70710677
    %v173 = vmul.f32 %v131, 0.70710677
    %v174 = vmul.f32 %v136, 0.70710677
    %v175 = vmul.f32 %v141, 0.70710677
    %v176 = vmul.f32 %v146, 0.70710677
    %v177 = vmul.f32 %v151, 0.70710677
    %v178 = vmul.f32 %v156, 0.70710677
    %v179 = vmul.f32 %v161, 0.70710677
    %v180 = verf.f32.pop %v172
    %v181 = verf.f32.pop %v173
    %v182 = verf.f32.pop %v174
    %v183 = verf.f32.pop %v175
    %v184 = verf.f32.pop %v176
    %v185 = verf.f32.pop %v177
    %v186 = verf.f32.pop %v178
    %v187 = verf.f32.pop %v179
    %v188 = vadd.f32 %v180, 1.0
    %v189 = vadd.f32 %v181, 1.0
    %v190 = vadd.f32 %v182, 1.0
    %v191 = vadd.f32 %v183, 1.0
    %v192 = vadd.f32 %v184, 1.0
    %v193 = vadd.f32 %v185, 1.0
    %v194 = vadd.f32 %v186, 1.0
    %v195 = vadd.f32 %v187, 1.0
    %v196 = vmul.f32 %v164, %v188
    %v197 = vmul.f32 %v165, %v189
    %v198 = vmul.f32 %v166, %v190
    %v199 = vmul.f32 %v167, %v191
    %v200 = vmul.f32 %v168, %v192
    %v201 = vmul.f32 %v169, %v193
    %v202 = vmul.f32 %v170, %v194
    %v203 = vmul.f32 %v171, %v195
    %204 = vst [vmem:[#allocation2] sm:$0xff] %v196
    %205 = vst [vmem:[#allocation2 + $0x8] sm:$0xff] %v197
    %206 = vst [vmem:[#allocation2 + $0x10] sm:$0xff] %v198
    %207 = vst [vmem:[#allocation2 + $0x18] sm:$0xff] %v199
    %208 = vst [vmem:[#allocation2 + $0x20] sm:$0xff] %v200
    %209 = vst [vmem:[#allocation2 + $0x28] sm:$0xff] %v201
    %210 = vst [vmem:[#allocation2 + $0x30] sm:$0xff] %v202
    %211 = vst [vmem:[#allocation2 + $0x38] sm:$0xff] %v203
    // Predicated region
    $region14: #{tpu_custom_call.1} parent=1 // pred_check
      _
    $region15: #{tpu_custom_call.1} parent=1 // pred_check_branch
      %213 = sbr.rel (0) target = $region17
    $region16: #{tpu_custom_call.1} parent=1 // pred_region
      %s215 = ssub.s32 1024, 1024
      %216 = vsyncadd [#allocation3], %s215
      %s217 = sshll.u32 [#allocation2], 4
      %s218 = int_to_ptr.vmem [resolvable:$true] %s217
      %223 = dma.vmem_to_hbm [thread:$0]  %s218, 1024, %s3, [#allocation3], 128, 128, 8
    $region17: #{tpu_custom_call.1} parent=1 // pred_fallthru
      _
    // Predicated region
    $region18: #{tpu_custom_call.1} parent=1 // pred_check
      _
    $region19: #{tpu_custom_call.1} parent=1 // pred_check_branch
      %225 = sbr.rel (0) target = $region21
    $region20: #{tpu_custom_call.1} parent=1 // pred_region
      %226 = dma.done [#allocation3], 1024
    $region21: #{tpu_custom_call.1} parent=1 // pred_fallthru
      _
    %227 = vsyncpa [#allocation3], 1

</llo_original>
